<compile_context>
chip_gen: v6e
topology: v6e:2x2x1
jax: 0.10.0
libtpu: 0.0.40
codegen_flags: <defaults>
</compile_context>

<pallas_src>
import functools

import jax
import jax.numpy as jnp
from jax import lax
from jax.experimental import pallas as pl
from jax.experimental.pallas import tpu as pltpu

SIGMA_LIST = (1.0, 2.0, 4.0, 8.0, 16.0)
_MAX_POW = 16  # cap the power-chain so exp error amplification stays <= 16x


def _round_up(x, n):
    return (x + n - 1) // n * n


def _plan_exp_anchors(sigma_list, max_pow=_MAX_POW):
    """Group gammas = 1/(2 sigma^2) so each is an integer power (<= max_pow)
    of an 'anchor' gamma.  For (1,2,4,8,16) this yields 2 anchors -> 2 exps."""
    gammas = sorted(1.0 / (2.0 * float(s) ** 2) for s in sigma_list)
    anchors = []  # list of [anchor_gamma, [int powers]]
    for g in gammas:
        placed = False
        for a, powers in anchors:
            r = g / a
            ri = int(round(r))
            if ri >= 1 and ri <= max_pow and abs(r - ri) <= 1e-9 * max(1.0, ri):
                powers.append(ri)
                placed = True
                break
        if not placed:
            anchors.append([g, [1]])
    return tuple((a, tuple(p)) for a, p in anchors)


def _int_power(x, n):
    """x**n for integer n>=1 via binary exponentiation (VPU multiplies)."""
    result = None
    base = x
    while n > 0:
        if n & 1:
            result = base if result is None else result * base
        n >>= 1
        if n > 0:
            base = base * base
    return result


def _fold_rows(block, tile):
    """(tile, tile) -> (8, tile) by summing aligned 8-sublane row groups (VPU)."""
    acc = block[0:8, :]
    for p in range(1, tile // 8):
        acc = acc + block[p * 8:(p + 1) * 8, :]
    return acc


def _mmd_tile_kernel(bi_ref, bj_ref,                 # scalar-prefetch schedules
                     zr_ref, zc_ref, sqr_ref, sqc_ref, wr_ref, wc_ref,
                     o_ref,
                     acc_s_ref, *maybe_abs,
                     anchors, m, biased, num_sigmas, tile):
    acc_a_ref = maybe_abs[0] if maybe_abs else None
    t = pl.program_id(0)

    @pl.when(t == 0)
    def _init():
        acc_s_ref[...] = jnp.zeros_like(acc_s_ref)
        if acc_a_ref is not None:
            acc_a_ref[...] = jnp.zeros_like(acc_a_ref)

    # Gram block on the MXU: contract the feature dim of both operands
    # directly (no explicit transpose of Z), accumulate in f32.
    zz = lax.dot_general(zr_ref[...], zc_ref[...],
                         (((1,), (1,)), ((), ())),
                         preferred_element_type=jnp.float32)      # (tile, tile)

    # Pairwise squared distances from hoisted row norms (row norms reused
    # across all column blocks and vice versa).
    exponent = sqr_ref[...] - 2.0 * zz + sqc_ref[...]             # (tile, tile)

    # RBF mixture: 2 exps (EUP) + VPU integer powers instead of num_sigmas exps.
    k = None
    for a_gamma, powers in anchors:
        base = jnp.exp((-a_gamma) * exponent)
        for p in powers:
            term = _int_power(base, p)
            k = term if k is None else k + term

    # Signed contribution: w_i * w_j * K  (w in {+1,-1,0}); K > 0 so the
    # "mask-only" contribution is simply its absolute value.
    signed = (k * wr_ref[...]) * wc_ref[...]

    bi = bi_ref[t]
    bj = bj_ref[t]
    factor = jnp.where(bi == bj, 1.0, 2.0).astype(jnp.float32)    # symmetry x2

    acc_s_ref[...] += factor * _fold_rows(signed, tile)
    if not biased:
        acc_a_ref[...] += factor * _fold_rows(jnp.abs(signed), tile)

    @pl.when(t == pl.num_programs(0) - 1)
    def _finalize():
        mf = jnp.float32(m)
        s_signed = jnp.sum(acc_s_ref[...], keepdims=True)          # (1, 1)
        if biased:
            mmd2 = s_signed / (mf * mf)
        else:
            s_abs = jnp.sum(acc_a_ref[...], keepdims=True)
            xx_plus_yy = 0.5 * (s_abs + s_signed)                  # K_XX + K_YY
            xy = 0.25 * (s_abs - s_signed)                         # K_XY
            diag_sum = 2.0 * mf * jnp.float32(num_sigmas)          # diag of XX+YY
            mmd2 = ((xx_plus_yy - diag_sum) / (mf * (mf - 1.0))
                    - 2.0 * xy / (mf * mf))
        o_ref[...] = mmd2


@functools.partial(jax.jit, static_argnames=("biased",))
def mmd_loss(x, y, biased=True):
    """MMDLoss.forward(x, y, biased) with sigma_list = SIGMA_LIST."""
    assert x.shape == y.shape and x.ndim == 2
    m, d = x.shape
    n = 2 * m

    d_pad = _round_up(d, 128)
    tile = min(256, _round_up(n, 128))      # multiple of 128 (=> also of 8)
    n_pad = _round_up(n, tile)
    nb = n_pad // tile

    # Z = [x; y], zero-padded to (n_pad, d_pad); zero rows/cols are harmless
    # (weights are 0 for padded rows, zero feature-padding changes nothing).
    z = jnp.concatenate([x, y], axis=0)
    z = jnp.pad(z, ((0, n_pad - n), (0, d_pad - d)))

    # Hoisted squared row norms (f32), as row (N,1) and column (1,N) views.
    zf = z.astype(jnp.float32)
    sq = jnp.sum(zf * zf, axis=1)
    sq_row = sq[:, None]
    sq_col = sq[None, :]

    # Signed weights: +1 for x rows, -1 for y rows, 0 for padding.
    w = jnp.concatenate([jnp.ones((m,), jnp.float32),
                         -jnp.ones((m,), jnp.float32),
                         jnp.zeros((n_pad - n,), jnp.float32)])
    w_row = w[:, None]
    w_col = w[None, :]

    # Upper-triangular block schedule (bi <= bj), delivered via scalar prefetch.
    pairs = [(i, j) for i in range(nb) for j in range(i, nb)]
    steps = len(pairs)
    bi_arr = jnp.asarray([p[0] for p in pairs], dtype=jnp.int32)
    bj_arr = jnp.asarray([p[1] for p in pairs], dtype=jnp.int32)

    anchors = _plan_exp_anchors(SIGMA_LIST)

    kernel = functools.partial(
        _mmd_tile_kernel,
        anchors=anchors, m=m, biased=biased,
        num_sigmas=len(SIGMA_LIST), tile=tile)

    # Abs accumulator only needed for the unbiased path.
    scratch_shapes = [pltpu.VMEM((8, tile), jnp.float32)]           # signed acc
    if not biased:
        scratch_shapes.append(pltpu.VMEM((8, tile), jnp.float32))   # abs acc

    itemsize = jnp.dtype(z.dtype).itemsize
    cost = pl.CostEstimate(
        flops=2 * steps * tile * tile * d_pad,
        transcendentals=len(anchors) * steps * tile * tile,
        bytes_accessed=2 * steps * tile * d_pad * itemsize
                       + 4 * steps * tile * 4 + 4)

    out = pl.pallas_call(
        kernel,
        out_shape=jax.ShapeDtypeStruct((1, 1), jnp.float32),
        grid_spec=pltpu.PrefetchScalarGridSpec(
            num_scalar_prefetch=2,
            grid=(steps,),
            in_specs=[
                pl.BlockSpec((tile, d_pad), lambda t, bi, bj: (bi[t], 0)),  # Z rows
                pl.BlockSpec((tile, d_pad), lambda t, bi, bj: (bj[t], 0)),  # Z cols
                pl.BlockSpec((tile, 1),     lambda t, bi, bj: (bi[t], 0)),  # ||z_i||^2
                pl.BlockSpec((1, tile),     lambda t, bi, bj: (0, bj[t])),  # ||z_j||^2
                pl.BlockSpec((tile, 1),     lambda t, bi, bj: (bi[t], 0)),  # w_i
                pl.BlockSpec((1, tile),     lambda t, bi, bj: (0, bj[t])),  # w_j
            ],
            out_specs=pl.BlockSpec((1, 1), lambda t, bi, bj: (0, 0)),
            scratch_shapes=scratch_shapes,
        ),
        compiler_params=pltpu.CompilerParams(
            dimension_semantics=("arbitrary",),
            vmem_limit_bytes=32 * 1024 * 1024),
        cost_estimate=cost,
    )(bi_arr, bj_arr, z, z, sq_row, sq_col, w_row, w_col)
    return out[0, 0]


def _mmd_reference(x, y, biased=True):
    """Pure-JAX reference mirroring the PyTorch mix_rbf_mmd2."""
    m = x.shape[0]
    z = jnp.concatenate([x, y], axis=0).astype(jnp.float32)
    zzt = z @ z.T
    sq = jnp.diag(zzt)[:, None]
    exponent = sq - 2.0 * zzt + sq.T
    k = sum(jnp.exp(-exponent / (2.0 * s ** 2)) for s in SIGMA_LIST)
    k_xx, k_xy, k_yy = k[:m, :m], k[:m, m:], k[m:, m:]
    if biased:
        return (k_xx.sum() + k_yy.sum() - 2.0 * k_xy.sum()) / (m * m)
    d = float(len(SIGMA_LIST))
    return ((k_xx.sum() - m * d) / (m * (m - 1))
            + (k_yy.sum() - m * d) / (m * (m - 1))
            - 2.0 * k_xy.sum() / (m * m))


if __name__ == "__main__":
    key = jax.random.PRNGKey(0)

    # Case 1: small, matches the module's typical small-feature usage.
    k1, k2, k3, k4 = jax.random.split(key, 4)
    x1 = jax.random.normal(k1, (8, 32), dtype=jnp.float32)
    y1 = jax.random.normal(k2, (8, 32), dtype=jnp.float32) + 0.5

    # Case 2: non-aligned shapes + multiple (triangular) Gram blocks.
    x2 = jax.random.normal(k3, (200, 24), dtype=jnp.float32)
    y2 = jax.random.normal(k4, (200, 24), dtype=jnp.float32) + 0.5

    ok = True
    for (xx, yy) in ((x1, y1), (x2, y2)):
        for biased in (True, False):
            out = jax.block_until_ready(mmd_loss(xx, yy, biased=biased))
            ref = _mmd_reference(xx, yy, biased=biased)
            ok &= bool(jnp.allclose(out, ref, rtol=1e-3, atol=1e-5))

    assert ok, "Pallas MMD kernel does not match reference"
    print("KERNEL_OK")
</pallas_src>

<mosaic_0001>
module attributes {stable_mosaic.version = 11 : i64} {
  func.func @_mmd_tile_kernel(%arg0: i32, %arg1: memref<1xi32, #tpu.memory_space<smem>>, %arg2: memref<1xi32, #tpu.memory_space<smem>>, %arg3: memref<128x128xf32, #tpu.memory_space<vmem>>, %arg4: memref<128x128xf32, #tpu.memory_space<vmem>>, %arg5: memref<128x1xf32, #tpu.memory_space<vmem>>, %arg6: memref<1x128xf32, #tpu.memory_space<vmem>>, %arg7: memref<128x1xf32, #tpu.memory_space<vmem>>, %arg8: memref<1x128xf32, #tpu.memory_space<vmem>>, %arg9: memref<1x1xf32, #tpu.memory_space<vmem>>, %arg10: memref<8x128xf32, #tpu.memory_space<vmem>>) attributes {dimension_semantics = [#tpu.dimension_semantics<arbitrary>], iteration_bounds = array<i64: 1>, scalar_prefetch = 2 : i64, scratch_operands = 1 : i64, tpu.core_type = #tpu.core_type<tc>, window_params = [{transform_indices = @transform_0, window_bounds = array<i64: 128, 128>}, {transform_indices = @transform_1, window_bounds = array<i64: 128, 128>}, {transform_indices = @transform_2, window_bounds = array<i64: 128, 1>}, {transform_indices = @transform_3, window_bounds = array<i64: 1, 128>}, {transform_indices = @transform_4, window_bounds = array<i64: 128, 1>}, {transform_indices = @transform_5, window_bounds = array<i64: 1, 128>}, {pipeline_mode = #tpu.pipeline_mode<synchronous>, transform_indices = @transform_6, window_bounds = array<i64: 1, 1>}]} {
    %c0_i32 = arith.constant 0 : i32
    %0 = arith.cmpi eq, %arg0, %c0_i32 : i32
    %1 = arith.extui %0 : i1 to i32
    %c0_i32_0 = arith.constant 0 : i32
    %2 = arith.cmpi ne, %1, %c0_i32_0 : i32
    scf.if %2 {
      %cst_23 = arith.constant 0.000000e+00 : f32
      %83 = vector.broadcast %cst_23 : f32 to vector<8x128xf32>
      %c0_24 = arith.constant 0 : index
      %c0_25 = arith.constant 0 : index
      %84 = vector.load %arg10[%c0_24, %c0_25] : memref<8x128xf32, #tpu.memory_space<vmem>>, vector<8x128xf32>
      tpu.vector_store %arg10[%c0_24, %c0_25], %83 {strides = array<i32>} : memref<8x128xf32, #tpu.memory_space<vmem>>, vector<8x128xf32>,
    } else {
    }
    %c0 = arith.constant 0 : index
    %c0_1 = arith.constant 0 : index
    %3 = vector.load %arg3[%c0, %c0_1] : memref<128x128xf32, #tpu.memory_space<vmem>>, vector<128x128xf32>
    %c0_2 = arith.constant 0 : index
    %c0_3 = arith.constant 0 : index
    %4 = vector.load %arg4[%c0_2, %c0_3] : memref<128x128xf32, #tpu.memory_space<vmem>>, vector<128x128xf32>
    %cst = arith.constant dense<0.000000e+00> : vector<128x128xf32>
    %5 = tpu.matmul %3, %4, %cst {dimension_numbers = #tpu.dot_dimension_numbers<[1], [1], [0], [0], [0, 0, 1, 0], [], []>} : vector<128x128xf32>, vector<128x128xf32>, vector<128x128xf32> -> vector<128x128xf32>
    %c0_4 = arith.constant 0 : index
    %c0_5 = arith.constant 0 : index
    %6 = vector.load %arg5[%c0_4, %c0_5] : memref<128x1xf32, #tpu.memory_space<vmem>>, vector<128x1xf32>
    %cst_6 = arith.constant 2.000000e+00 : f32
    %7 = vector.broadcast %cst_6 : f32 to vector<128x128xf32>
    %8 = arith.mulf %7, %5 : vector<128x128xf32>
    %9 = vector.broadcast %6 : vector<128x1xf32> to vector<128x128xf32>
    %10 = arith.subf %9, %8 : vector<128x128xf32>
    %c0_7 = arith.constant 0 : index
    %c0_8 = arith.constant 0 : index
    %11 = vector.load %arg6[%c0_7, %c0_8] : memref<1x128xf32, #tpu.memory_space<vmem>>, vector<1x128xf32>
    %12 = vector.broadcast %11 : vector<1x128xf32> to vector<128x128xf32>
    %13 = arith.addf %10, %12 : vector<128x128xf32>
    %cst_9 = arith.constant -0.001953125 : f32
    %14 = vector.broadcast %cst_9 : f32 to vector<128x128xf32>
    %15 = arith.mulf %14, %13 : vector<128x128xf32>
    %16 = math.exp %15 : vector<128x128xf32>
    %17 = arith.mulf %16, %16 : vector<128x128xf32>
    %18 = arith.mulf %17, %17 : vector<128x128xf32>
    %19 = arith.addf %16, %18 : vector<128x128xf32>
    %20 = arith.mulf %16, %16 : vector<128x128xf32>
    %21 = arith.mulf %20, %20 : vector<128x128xf32>
    %22 = arith.mulf %21, %21 : vector<128x128xf32>
    %23 = arith.mulf %22, %22 : vector<128x128xf32>
    %24 = arith.addf %19, %23 : vector<128x128xf32>
    %cst_10 = arith.constant -1.250000e-01 : f32
    %25 = vector.broadcast %cst_10 : f32 to vector<128x128xf32>
    %26 = arith.mulf %25, %13 : vector<128x128xf32>
    %27 = math.exp %26 : vector<128x128xf32>
    %28 = arith.addf %24, %27 : vector<128x128xf32>
    %29 = arith.mulf %27, %27 : vector<128x128xf32>
    %30 = arith.mulf %29, %29 : vector<128x128xf32>
    %31 = arith.addf %28, %30 : vector<128x128xf32>
    %c0_11 = arith.constant 0 : index
    %c0_12 = arith.constant 0 : index
    %32 = vector.load %arg7[%c0_11, %c0_12] : memref<128x1xf32, #tpu.memory_space<vmem>>, vector<128x1xf32>
    %33 = vector.broadcast %32 : vector<128x1xf32> to vector<128x128xf32>
    %34 = arith.mulf %31, %33 : vector<128x128xf32>
    %c0_13 = arith.constant 0 : index
    %c0_14 = arith.constant 0 : index
    %35 = vector.load %arg8[%c0_13, %c0_14] : memref<1x128xf32, #tpu.memory_space<vmem>>, vector<1x128xf32>
    %36 = vector.broadcast %35 : vector<1x128xf32> to vector<128x128xf32>
    %37 = arith.mulf %34, %36 : vector<128x128xf32>
    %38 = arith.index_cast %arg0 : i32 to index
    %39 = memref.load %arg1[%38] : memref<1xi32, #tpu.memory_space<smem>>
    %40 = arith.index_cast %arg0 : i32 to index
    %41 = memref.load %arg2[%40] : memref<1xi32, #tpu.memory_space<smem>>
    %42 = arith.cmpi eq, %39, %41 : i32
    %cst_15 = arith.constant 1.000000e+00 : f32
    %cst_16 = arith.constant 2.000000e+00 : f32
    %43 = arith.select %42, %cst_15, %cst_16 : f32
    %c0_17 = arith.constant 0 : index
    %c0_18 = arith.constant 0 : index
    %44 = vector.load %arg10[%c0_17, %c0_18] : memref<8x128xf32, #tpu.memory_space<vmem>>, vector<8x128xf32>
    %45 = vector.extract_strided_slice %37 {offsets = [0, 0], sizes = [8, 128], strides = [1, 1]} : vector<128x128xf32> to vector<8x128xf32>
    %46 = vector.extract_strided_slice %37 {offsets = [8, 0], sizes = [8, 128], strides = [1, 1]} : vector<128x128xf32> to vector<8x128xf32>
    %47 = arith.addf %45, %46 : vector<8x128xf32>
    %48 = vector.extract_strided_slice %37 {offsets = [16, 0], sizes = [8, 128], strides = [1, 1]} : vector<128x128xf32> to vector<8x128xf32>
    %49 = arith.addf %47, %48 : vector<8x128xf32>
    %50 = vector.extract_strided_slice %37 {offsets = [24, 0], sizes = [8, 128], strides = [1, 1]} : vector<128x128xf32> to vector<8x128xf32>
    %51 = arith.addf %49, %50 : vector<8x128xf32>
    %52 = vector.extract_strided_slice %37 {offsets = [32, 0], sizes = [8, 128], strides = [1, 1]} : vector<128x128xf32> to vector<8x128xf32>
    %53 = arith.addf %51, %52 : vector<8x128xf32>
    %54 = vector.extract_strided_slice %37 {offsets = [40, 0], sizes = [8, 128], strides = [1, 1]} : vector<128x128xf32> to vector<8x128xf32>
    %55 = arith.addf %53, %54 : vector<8x128xf32>
    %56 = vector.extract_strided_slice %37 {offsets = [48, 0], sizes = [8, 128], strides = [1, 1]} : vector<128x128xf32> to vector<8x128xf32>
    %57 = arith.addf %55, %56 : vector<8x128xf32>
    %58 = vector.extract_strided_slice %37 {offsets = [56, 0], sizes = [8, 128], strides = [1, 1]} : vector<128x128xf32> to vector<8x128xf32>
    %59 = arith.addf %57, %58 : vector<8x128xf32>
    %60 = vector.extract_strided_slice %37 {offsets = [64, 0], sizes = [8, 128], strides = [1, 1]} : vector<128x128xf32> to vector<8x128xf32>
    %61 = arith.addf %59, %60 : vector<8x128xf32>
    %62 = vector.extract_strided_slice %37 {offsets = [72, 0], sizes = [8, 128], strides = [1, 1]} : vector<128x128xf32> to vector<8x128xf32>
    %63 = arith.addf %61, %62 : vector<8x128xf32>
    %64 = vector.extract_strided_slice %37 {offsets = [80, 0], sizes = [8, 128], strides = [1, 1]} : vector<128x128xf32> to vector<8x128xf32>
    %65 = arith.addf %63, %64 : vector<8x128xf32>
    %66 = vector.extract_strided_slice %37 {offsets = [88, 0], sizes = [8, 128], strides = [1, 1]} : vector<128x128xf32> to vector<8x128xf32>
    %67 = arith.addf %65, %66 : vector<8x128xf32>
    %68 = vector.extract_strided_slice %37 {offsets = [96, 0], sizes = [8, 128], strides = [1, 1]} : vector<128x128xf32> to vector<8x128xf32>
    %69 = arith.addf %67, %68 : vector<8x128xf32>
    %70 = vector.extract_strided_slice %37 {offsets = [104, 0], sizes = [8, 128], strides = [1, 1]} : vector<128x128xf32> to vector<8x128xf32>
    %71 = arith.addf %69, %70 : vector<8x128xf32>
    %72 = vector.extract_strided_slice %37 {offsets = [112, 0], sizes = [8, 128], strides = [1, 1]} : vector<128x128xf32> to vector<8x128xf32>
    %73 = arith.addf %71, %72 : vector<8x128xf32>
    %74 = vector.extract_strided_slice %37 {offsets = [120, 0], sizes = [8, 128], strides = [1, 1]} : vector<128x128xf32> to vector<8x128xf32>
    %75 = arith.addf %73, %74 : vector<8x128xf32>
    %76 = vector.broadcast %43 : f32 to vector<8x128xf32>
    %77 = arith.mulf %76, %75 : vector<8x128xf32>
    %78 = arith.addf %44, %77 : vector<8x128xf32>
    %c0_19 = arith.constant 0 : index
    %c0_20 = arith.constant 0 : index
    %79 = vector.load %arg10[%c0_19, %c0_20] : memref<8x128xf32, #tpu.memory_space<vmem>>, vector<8x128xf32>
    tpu.vector_store %arg10[%c0_19, %c0_20], %78 {strides = array<i32>} : memref<8x128xf32, #tpu.memory_space<vmem>>, vector<8x128xf32>,
    %c0_i32_21 = arith.constant 0 : i32
    %80 = arith.cmpi eq, %arg0, %c0_i32_21 : i32
    %81 = arith.extui %80 : i1 to i32
    %c0_i32_22 = arith.constant 0 : i32
    %82 = arith.cmpi ne, %81, %c0_i32_22 : i32
    scf.if %82 {
      %c0_23 = arith.constant 0 : index
      %c0_24 = arith.constant 0 : index
      %83 = vector.load %arg10[%c0_23, %c0_24] : memref<8x128xf32, #tpu.memory_space<vmem>>, vector<8x128xf32>
      %84 = vector.shape_cast %83 : vector<8x128xf32> to vector<1x8x128xf32>
      %cst_25 = arith.constant dense<0.000000e+00> : vector<1xf32>
      %85 = vector.multi_reduction <add>, %84, %cst_25 [1, 2] : vector<1x8x128xf32> to vector<1xf32>
      %86 = vector.shape_cast %85 : vector<1xf32> to vector<1x1x1xf32>
      %87 = vector.extract %86[0, 0, 0] : f32 from vector<1x1x1xf32>
      %88 = vector.broadcast %87 : f32 to vector<1x1xf32>
      %cst_26 = arith.constant 8.000000e+00 : f32
      %cst_27 = arith.constant 8.000000e+00 : f32
      %89 = arith.mulf %cst_26, %cst_27 : f32
      %90 = vector.broadcast %89 : f32 to vector<1x1xf32>
      %91 = arith.divf %88, %90 : vector<1x1xf32>
      %c0_28 = arith.constant 0 : index
      %c0_29 = arith.constant 0 : index
      %92 = vector.load %arg9[%c0_28, %c0_29] : memref<1x1xf32, #tpu.memory_space<vmem>>, vector<1x1xf32>
      tpu.vector_store %arg9[%c0_28, %c0_29], %91 {strides = array<i32>} : memref<1x1xf32, #tpu.memory_space<vmem>>, vector<1x1xf32>,
    } else {
    }
    return
  }
  func.func @transform_0(%arg0: i32, %arg1: memref<1xi32, #tpu.memory_space<smem>>, %arg2: memref<1xi32, #tpu.memory_space<smem>>) -> (i32, i32) {
    %0 = arith.index_cast %arg0 : i32 to index
    %1 = memref.load %arg1[%0] : memref<1xi32, #tpu.memory_space<smem>>
    %c0_i32 = arith.constant 0 : i32
    %c0_i32_0 = arith.constant 0 : i32
    return %1, %c0_i32 : i32, i32
  }
  func.func @transform_1(%arg0: i32, %arg1: memref<1xi32, #tpu.memory_space<smem>>, %arg2: memref<1xi32, #tpu.memory_space<smem>>) -> (i32, i32) {
    %0 = arith.index_cast %arg0 : i32 to index
    %1 = memref.load %arg2[%0] : memref<1xi32, #tpu.memory_space<smem>>
    %c0_i32 = arith.constant 0 : i32
    %c0_i32_0 = arith.constant 0 : i32
    return %1, %c0_i32 : i32, i32
  }
  func.func @transform_2(%arg0: i32, %arg1: memref<1xi32, #tpu.memory_space<smem>>, %arg2: memref<1xi32, #tpu.memory_space<smem>>) -> (i32, i32) {
    %0 = arith.index_cast %arg0 : i32 to index
    %1 = memref.load %arg1[%0] : memref<1xi32, #tpu.memory_space<smem>>
    %c0_i32 = arith.constant 0 : i32
    %c0_i32_0 = arith.constant 0 : i32
    return %1, %c0_i32 : i32, i32
  }
  func.func @transform_3(%arg0: i32, %arg1: memref<1xi32, #tpu.memory_space<smem>>, %arg2: memref<1xi32, #tpu.memory_space<smem>>) -> (i32, i32) {
    %0 = arith.index_cast %arg0 : i32 to index
    %1 = memref.load %arg2[%0] : memref<1xi32, #tpu.memory_space<smem>>
    %c0_i32 = arith.constant 0 : i32
    %c0_i32_0 = arith.constant 0 : i32
    return %c0_i32, %1 : i32, i32
  }
  func.func @transform_4(%arg0: i32, %arg1: memref<1xi32, #tpu.memory_space<smem>>, %arg2: memref<1xi32, #tpu.memory_space<smem>>) -> (i32, i32) {
    %0 = arith.index_cast %arg0 : i32 to index
    %1 = memref.load %arg1[%0] : memref<1xi32, #tpu.memory_space<smem>>
    %c0_i32 = arith.constant 0 : i32
    %c0_i32_0 = arith.constant 0 : i32
    return %1, %c0_i32 : i32, i32
  }
  func.func @transform_5(%arg0: i32, %arg1: memref<1xi32, #tpu.memory_space<smem>>, %arg2: memref<1xi32, #tpu.memory_space<smem>>) -> (i32, i32) {
    %0 = arith.index_cast %arg0 : i32 to index
    %1 = memref.load %arg2[%0] : memref<1xi32, #tpu.memory_space<smem>>
    %c0_i32 = arith.constant 0 : i32
    %c0_i32_0 = arith.constant 0 : i32
    return %c0_i32, %1 : i32, i32
  }
  func.func @transform_6(%arg0: i32, %arg1: memref<1xi32, #tpu.memory_space<smem>>, %arg2: memref<1xi32, #tpu.memory_space<smem>>) -> (i32, i32) {
    %c0_i32 = arith.constant 0 : i32
    %c0_i32_0 = arith.constant 0 : i32
    %c0_i32_1 = arith.constant 0 : i32
    return %c0_i32, %c0_i32_0 : i32, i32
  }
}

</mosaic_0001>

<llo_original>
// kernel: mmd_loss.1
$region0: #{mmd_loss.1}
  #allocation0 [shape = 'u32[]', space=smem, size = 0x4, offset = 0x4, fixed_abs, tag = 'smem constant byte address 0x4 - core index']
  #allocation1 [shape = 'u32[144,128]{1,0:T(1,128)}', space=vmem, size = 0x12000, scoped, tag = 'internal scratch']
  #allocation2 [shape = 'f32[8,128]{1,0:T(8,128)}', space=vmem, size = 0x1000, scoped, tag = 'scratch operand']
  #allocation3 [shape = 's32[1]{0}', space=sflag, size = 0x4, scoped, tag = 'scoped memory for mmd_loss.1']
  #allocation4 [shape = 's32[1]{0:T(128)S(6)}', space=smem, size = 0x200, scoped, tag = 'prefetched SMEM operand 0']
  #allocation5 [shape = 's32[1]{0:T(128)S(6)}', space=smem, size = 0x200, scoped, tag = 'prefetched SMEM operand 1']
  %s0 = inlined_call_operand.<no memory space> [shape: s32[1], index: 0, kind: input, shape index: {}, may-alias: {0,1}]
  %s1 = inlined_call_operand.<no memory space> [shape: s32[1], index: 1, kind: input, shape index: {}, may-alias: {0,1}]
  %s2 = inlined_call_operand.vmem [shape: f32[128,128], index: 2, kind: input, shape index: {}, may-alias: {2,3}]
  %s3 = inlined_call_operand.vmem [shape: f32[128,128], index: 3, kind: input, shape index: {}, may-alias: {2,3}]
  %s4 = inlined_call_operand.vmem [shape: f32[128,1], index: 4, kind: input, shape index: {}]
  %s5 = inlined_call_operand.vmem [shape: f32[1,128], index: 5, kind: input, shape index: {}]
  %s6 = inlined_call_operand.vmem [shape: f32[128,1], index: 6, kind: input, shape index: {}]
  %s7 = inlined_call_operand.vmem [shape: f32[1,128], index: 7, kind: input, shape index: {}]
  %s8 = inlined_call_operand.hbm [shape: f32[1,1], index: 8, kind: output, shape index: {}]
  %s9 = sld [smem:[#allocation0]]
  $region42: #{mmd_loss.1} parent=0
    _
  %s11 = ssub.s32 1, %s9
  %s12 = scalar_select 0, %s11, %s9
  %13 = sst [smem:[#allocation4]] %s0
  %14 = sst [smem:[#allocation5]] %s1
  $region1: #{mmd_loss.1} parent=0
    #allocation6 [shape = 'u8[512]{0}', space=vmem, size = 0x400, scoped, tag = 'output window, operand 0, single buffered']
    #allocation7 [shape = 's32[1]{0}', space=sflag, size = 0x4, scoped, tag = 'scoped memory for mmd_loss.1']
    %15 = vsyncpa [#allocation7], 0
    // Predicated region
    $region2: #{mmd_loss.1} parent=1 // pred_check
      _
    $region3: #{mmd_loss.1} parent=1 // pred_check_branch
      %17 = sbr.rel (0) target = $region5
    $region4: #{mmd_loss.1} parent=1 // pred_region
      %s18 = sld [smem:[#allocation4]]
      %s19 = smul.u32 16, %s18
      %p20 = scmp.lt.s32.totalorder %s19, 15
      %s21 = scalar_select %p20, %s19, 15
      %s22 = smul.addr %s21, 8
      %s23 = scalar_lea.vmem %s2, %s22
      %s24 = sld [smem:[#allocation4]]
      %s25 = smul.u32 16, %s24
    $region5: #{mmd_loss.1} parent=1 // pred_fallthru
      _
    // Predicated region
    $region6: #{mmd_loss.1} parent=1 // pred_check
      _
    $region7: #{mmd_loss.1} parent=1 // pred_check_branch
      %27 = sbr.rel (0) target = $region9
    $region8: #{mmd_loss.1} parent=1 // pred_region
      %s28 = sld [smem:[#allocation5]]
      %s29 = smul.u32 16, %s28
      %p30 = scmp.lt.s32.totalorder %s29, 15
      %s31 = scalar_select %p30, %s29, 15
      %s32 = smul.addr %s31, 8
      %s33 = scalar_lea.vmem %s3, %s32
      %s34 = sld [smem:[#allocation5]]
      %s35 = smul.u32 16, %s34
    $region9: #{mmd_loss.1} parent=1 // pred_fallthru
      _
    // Predicated region
    $region10: #{mmd_loss.1} parent=1 // pred_check
      _
    $region11: #{mmd_loss.1} parent=1 // pred_check_branch
      %37 = sbr.rel (0) target = $region13
    $region12: #{mmd_loss.1} parent=1 // pred_region
      %s38 = sld [smem:[#allocation4]]
      %s39 = smul.u32 16, %s38
      %p40 = scmp.lt.s32.totalorder %s39, 15
      %s41 = scalar_select %p40, %s39, 15
      %s42 = smul.addr %s41, 8
      %s43 = scalar_lea.vmem %s4, %s42
      %s44 = sld [smem:[#allocation4]]
      %s45 = smul.u32 16, %s44
    $region13: #{mmd_loss.1} parent=1 // pred_fallthru
      _
    // Predicated region
    $region14: #{mmd_loss.1} parent=1 // pred_check
      _
    $region15: #{mmd_loss.1} parent=1 // pred_check_branch
      %47 = sbr.rel (0) target = $region17
    $region16: #{mmd_loss.1} parent=1 // pred_region
      %s48 = sld [smem:[#allocation5]]
      %p49 = scmp.lt.s32.totalorder %s48, 0
      %s50 = scalar_select %p49, %s48, 0
      %s51 = scalar_lea.vmem %s5, %s50
      %s52 = sld [smem:[#allocation5]]
    $region17: #{mmd_loss.1} parent=1 // pred_fallthru
      _
    // Predicated region
    $region18: #{mmd_loss.1} parent=1 // pred_check
      _
    $region19: #{mmd_loss.1} parent=1 // pred_check_branch
      %54 = sbr.rel (0) target = $region21
    $region20: #{mmd_loss.1} parent=1 // pred_region
      %s55 = sld [smem:[#allocation4]]
      %s56 = smul.u32 16, %s55
      %p57 = scmp.lt.s32.totalorder %s56, 15
      %s58 = scalar_select %p57, %s56, 15
      %s59 = smul.addr %s58, 8
      %s60 = scalar_lea.vmem %s6, %s59
      %s61 = sld [smem:[#allocation4]]
      %s62 = smul.u32 16, %s61
    $region21: #{mmd_loss.1} parent=1 // pred_fallthru
      _
    // Predicated region
    $region22: #{mmd_loss.1} parent=1 // pred_check
      _
    $region23: #{mmd_loss.1} parent=1 // pred_check_branch
      %64 = sbr.rel (0) target = $region25
    $region24: #{mmd_loss.1} parent=1 // pred_region
      %s65 = sld [smem:[#allocation5]]
      %p66 = scmp.lt.s32.totalorder %s65, 0
      %s67 = scalar_select %p66, %s65, 0
      %s68 = scalar_lea.vmem %s7, %s67
      %s69 = sld [smem:[#allocation5]]
    $region25: #{mmd_loss.1} parent=1 // pred_fallthru
      _
    %s70 = sld [smem:[#allocation4]]
    %s71 = smul.u32 16, %s70
    %p72 = scmp.lt.s32.totalorder %s71, 15
    %s73 = scalar_select %p72, %s71, 15
    %s74 = smul.addr %s73, 8
    %s75 = scalar_lea.vmem %s2, %s74
    %s76 = sld [smem:[#allocation5]]
    %s77 = smul.u32 16, %s76
    %p78 = scmp.lt.s32.totalorder %s77, 15
    %s79 = scalar_select %p78, %s77, 15
    %s80 = smul.addr %s79, 8
    %s81 = scalar_lea.vmem %s3, %s80
    %s82 = sld [smem:[#allocation4]]
    %s83 = smul.u32 16, %s82
    %p84 = scmp.lt.s32.totalorder %s83, 15
    %s85 = scalar_select %p84, %s83, 15
    %s86 = smul.addr %s85, 8
    %s87 = scalar_lea.vmem %s4, %s86
    %s88 = sld [smem:[#allocation5]]
    %p89 = scmp.lt.s32.totalorder %s88, 0
    %s90 = scalar_select %p89, %s88, 0
    %s91 = scalar_lea.vmem %s5, %s90
    %s92 = sld [smem:[#allocation4]]
    %s93 = smul.u32 16, %s92
    %p94 = scmp.lt.s32.totalorder %s93, 15
    %s95 = scalar_select %p94, %s93, 15
    %s96 = smul.addr %s95, 8
    %s97 = scalar_lea.vmem %s6, %s96
    %s98 = sld [smem:[#allocation5]]
    %p99 = scmp.lt.s32.totalorder %s98, 0
    %s100 = scalar_select %p99, %s98, 0
    %s101 = scalar_lea.vmem %s7, %s100
    %s102 = sld [smem:[#allocation4]]
    %s103 = smul.u32 16, %s102
    %p104 = scmp.lt.s32.totalorder %s103, 15
    %s105 = scalar_select %p104, %s103, 15
    %s106 = smul.addr %s105, 8
    %s107 = scalar_lea.vmem %s2, %s106
    %s108 = sld [smem:[#allocation4]]
    %s109 = smul.u32 16, %s108
    %s110 = sld [smem:[#allocation5]]
    %s111 = smul.u32 16, %s110
    %p112 = scmp.lt.s32.totalorder %s111, 15
    %s113 = scalar_select %p112, %s111, 15
    %s114 = smul.addr %s113, 8
    %s115 = scalar_lea.vmem %s3, %s114
    %s116 = sld [smem:[#allocation5]]
    %s117 = smul.u32 16, %s116
    %s118 = sld [smem:[#allocation4]]
    %s119 = smul.u32 16, %s118
    %p120 = scmp.lt.s32.totalorder %s119, 15
    %s121 = scalar_select %p120, %s119, 15
    %s122 = smul.addr %s121, 8
    %s123 = scalar_lea.vmem %s4, %s122
    %s124 = sld [smem:[#allocation4]]
    %s125 = smul.u32 16, %s124
    %s126 = sld [smem:[#allocation5]]
    %p127 = scmp.lt.s32.totalorder %s126, 0
    %s128 = scalar_select %p127, %s126, 0
    %s129 = scalar_lea.vmem %s5, %s128
    %s130 = sld [smem:[#allocation5]]
    %s131 = sld [smem:[#allocation4]]
    %s132 = smul.u32 16, %s131
    %p133 = scmp.lt.s32.totalorder %s132, 15
    %s134 = scalar_select %p133, %s132, 15
    %s135 = smul.addr %s134, 8
    %s136 = scalar_lea.vmem %s6, %s135
    %s137 = sld [smem:[#allocation4]]
    %s138 = smul.u32 16, %s137
    %s139 = sld [smem:[#allocation5]]
    %p140 = scmp.lt.s32.totalorder %s139, 0
    %s141 = scalar_select %p140, %s139, 0
    %s142 = scalar_lea.vmem %s7, %s141
    %s143 = sld [smem:[#allocation5]]
    %p144 = scmp.eq.s32.totalorder 0, 0
    // Predicated region
    $region26: #{mmd_loss.1} parent=1 // pred_check
      %p145 = pneg %p144
    $region27: #{mmd_loss.1} parent=1 // pred_check_branch
      %147 = sbr.rel (%p145) target = $region29
    $region28: #{mmd_loss.1} parent=1 // pred_region
      %148 = vst [vmem:[#allocation2] sm:$0xff] 0.0
    $region29: #{mmd_loss.1} parent=1 // pred_fallthru
      _
    %v149 = vld [vmem:[%s107] sm:$0xff]
    %v150 = vld [vmem:[%s107 + $0x8] sm:$0xff]
    %v151 = vld [vmem:[%s107 + $0x10] sm:$0xff]
    %v152 = vld [vmem:[%s107 + $0x18] sm:$0xff]
    %v153 = vld [vmem:[%s107 + $0x20] sm:$0xff]
    %v154 = vld [vmem:[%s107 + $0x28] sm:$0xff]
    %v155 = vld [vmem:[%s107 + $0x30] sm:$0xff]
    %v156 = vld [vmem:[%s107 + $0x38] sm:$0xff]
    %v157 = vld [vmem:[%s107 + $0x40] sm:$0xff]
    %v158 = vld [vmem:[%s107 + $0x48] sm:$0xff]
    %v159 = vld [vmem:[%s107 + $0x50] sm:$0xff]
    %v160 = vld [vmem:[%s107 + $0x58] sm:$0xff]
    %v161 = vld [vmem:[%s107 + $0x60] sm:$0xff]
    %v162 = vld [vmem:[%s107 + $0x68] sm:$0xff]
    %v163 = vld [vmem:[%s107 + $0x70] sm:$0xff]
    %v164 = vld [vmem:[%s107 + $0x78] sm:$0xff]
    %v165 = vld [vmem:[%s115] sm:$0xff]
    %v166 = vld [vmem:[%s115 + $0x8] sm:$0xff]
    %v167 = vld [vmem:[%s115 + $0x10] sm:$0xff]
    %v168 = vld [vmem:[%s115 + $0x18] sm:$0xff]
    %v169 = vld [vmem:[%s115 + $0x20] sm:$0xff]
    %v170 = vld [vmem:[%s115 + $0x28] sm:$0xff]
    %v171 = vld [vmem:[%s115 + $0x30] sm:$0xff]
    %v172 = vld [vmem:[%s115 + $0x38] sm:$0xff]
    %v173 = vld [vmem:[%s115 + $0x40] sm:$0xff]
    %v174 = vld [vmem:[%s115 + $0x48] sm:$0xff]
    %v175 = vld [vmem:[%s115 + $0x50] sm:$0xff]
    %v176 = vld [vmem:[%s115 + $0x58] sm:$0xff]
    %v177 = vld [vmem:[%s115 + $0x60] sm:$0xff]
    %v178 = vld [vmem:[%s115 + $0x68] sm:$0xff]
    %v179 = vld [vmem:[%s115 + $0x70] sm:$0xff]
    %v180 = vld [vmem:[%s115 + $0x78] sm:$0xff]
    %181 = vmatprep.subr.mxu0 0.0
    %182 = vmatpush1.xpose.msra.mxu0 %v180
    %183 = vmatprep.subr.mxu0 0.0
    %184 = vmatpush1.xpose.msra.mxu0 %v179
    %185 = vmatprep.subr.mxu0 0.0
    %186 = vmatpush1.xpose.msra.mxu0 %v178
    %187 = vmatprep.subr.mxu0 0.0
    %188 = vmatpush1.xpose.msra.mxu0 %v177
    %189 = vmatprep.subr.mxu0 0.0
    %190 = vmatpush1.xpose.msra.mxu0 %v176
    %191 = vmatprep.subr.mxu0 0.0
    %192 = vmatpush1.xpose.msra.mxu0 %v175
    %193 = vmatprep.subr.mxu0 0.0
    %194 = vmatpush1.xpose.msra.mxu0 %v174
    %195 = vmatprep.subr.mxu0 0.0
    %196 = vmatpush1.xpose.msra.mxu0 %v173
    %197 = vmatprep.subr.mxu0 0.0
    %198 = vmatpush1.xpose.msra.mxu0 %v172
    %199 = vmatprep.subr.mxu0 0.0
    %200 = vmatpush1.xpose.msra.mxu0 %v171
    %201 = vmatprep.subr.mxu0 0.0
    %202 = vmatpush1.xpose.msra.mxu0 %v170
    %203 = vmatprep.subr.mxu0 0.0
    %204 = vmatpush1.xpose.msra.mxu0 %v169
    %205 = vmatprep.subr.mxu0 0.0
    %206 = vmatpush1.xpose.msra.mxu0 %v168
    %207 = vmatprep.subr.mxu0 0.0
    %208 = vmatpush1.xpose.msra.mxu0 %v167
    %209 = vmatprep.subr.mxu0 0.0
    %210 = vmatpush1.xpose.msra.mxu0 %v166
    %211 = vmatprep.subr.mxu0 0.0
    %212 = vmatpush1.xpose.msra.mxu0 %v165
    %213 = vmatprep.subr.mxu0 0.0
    %214 = vmatpush2.xpose.msra.mxu0 0.0
    %215 = vmatprep.subr.mxu0 0.0
    %216 = vmatpush2.xpose.msra.mxu0 0.0
    %217 = vmatprep.subr.mxu0 0.0
    %218 = vmatpush2.xpose.msra.mxu0 0.0
    %219 = vmatprep.subr.mxu0 0.0
    %220 = vmatpush2.xpose.msra.mxu0 0.0
    %221 = vmatprep.subr.mxu0 0.0
    %222 = vmatpush2.xpose.msra.mxu0 0.0
    %223 = vmatprep.subr.mxu0 0.0
    %224 = vmatpush2.xpose.msra.mxu0 0.0
    %225 = vmatprep.subr.mxu0 0.0
    %226 = vmatpush2.xpose.msra.mxu0 0.0
    %227 = vmatprep.subr.mxu0 0.0
    %228 = vmatpush2.xpose.msra.mxu0 0.0
    %229 = vmatprep.subr.mxu0 0.0
    %230 = vmatpush2.xpose.msra.mxu0 0.0
    %231 = vmatprep.subr.mxu0 0.0
    %232 = vmatpush2.xpose.msra.mxu0 0.0
    %233 = vmatprep.subr.mxu0 0.0
    %234 = vmatpush2.xpose.msra.mxu0 0.0
    %235 = vmatprep.subr.mxu0 0.0
    %236 = vmatpush2.xpose.msra.mxu0 0.0
    %237 = vmatprep.subr.mxu0 0.0
    %238 = vmatpush2.xpose.msra.mxu0 0.0
    %239 = vmatprep.subr.mxu0 0.0
    %240 = vmatpush2.xpose.msra.mxu0 0.0
    %241 = vmatprep.subr.mxu0 0.0
    %242 = vmatpush2.xpose.msra.mxu0 0.0
    %243 = vmatprep.subr.mxu0 0.0
    %244 = vmatpush2.xpose.msra.mxu0 0.0
    %245 = vmatprep.mubr.f32.mxu0 0.0
    %246 = vmatmul.mubr.f32.gmra.mxu0 %v149
    %v247 = vpop.f32.mrf.mxu0
    %v248 = vadd.f32 0.0, %v247
    %v249 = vpop.f32.mrf.mxu0
    %250 = vmatprep.mubr.f32.mxu0 0.0
    %251 = vmatmul.mubr.f32.gmra.mxu0 %v150
    %v252 = vpop.f32.mrf.mxu0
    %v253 = vadd.f32 0.0, %v252
    %v254 = vpop.f32.mrf.mxu0
    %255 = vmatprep.mubr.f32.mxu0 0.0
    %256 = vmatmul.mubr.f32.gmra.mxu0 %v151
    %v257 = vpop.f32.mrf.mxu0
    %v258 = vadd.f32 0.0, %v257
    %v259 = vpop.f32.mrf.mxu0
    %260 = vmatprep.mubr.f32.mxu0 0.0
    %261 = vmatmul.mubr.f32.gmra.mxu0 %v152
    %v262 = vpop.f32.mrf.mxu0
    %v263 = vadd.f32 0.0, %v262
    %v264 = vpop.f32.mrf.mxu0
    %265 = vmatprep.mubr.f32.mxu0 0.0
    %266 = vmatmul.mubr.f32.gmra.mxu0 %v153
    %v267 = vpop.f32.mrf.mxu0
    %v268 = vadd.f32 0.0, %v267
    %v269 = vpop.f32.mrf.mxu0
    %270 = vmatprep.mubr.f32.mxu0 0.0
    %271 = vmatmul.mubr.f32.gmra.mxu0 %v154
    %v272 = vpop.f32.mrf.mxu0
    %v273 = vadd.f32 0.0, %v272
    %v274 = vpop.f32.mrf.mxu0
    %275 = vmatprep.mubr.f32.mxu0 0.0
    %276 = vmatmul.mubr.f32.gmra.mxu0 %v155
    %v277 = vpop.f32.mrf.mxu0
    %v278 = vadd.f32 0.0, %v277
    %v279 = vpop.f32.mrf.mxu0
    %280 = vmatprep.mubr.f32.mxu0 0.0
    %281 = vmatmul.mubr.f32.gmra.mxu0 %v156
    %v282 = vpop.f32.mrf.mxu0
    %v283 = vadd.f32 0.0, %v282
    %v284 = vpop.f32.mrf.mxu0
    %285 = vmatprep.mubr.f32.mxu0 0.0
    %286 = vmatmul.mubr.f32.gmra.mxu0 %v157
    %v287 = vpop.f32.mrf.mxu0
    %v288 = vadd.f32 0.0, %v287
    %v289 = vpop.f32.mrf.mxu0
    %290 = vmatprep.mubr.f32.mxu0 0.0
    %291 = vmatmul.mubr.f32.gmra.mxu0 %v158
    %v292 = vpop.f32.mrf.mxu0
    %v293 = vadd.f32 0.0, %v292
    %v294 = vpop.f32.mrf.mxu0
    %295 = vmatprep.mubr.f32.mxu0 0.0
    %296 = vmatmul.mubr.f32.gmra.mxu0 %v159
    %v297 = vpop.f32.mrf.mxu0
    %v298 = vadd.f32 0.0, %v297
    %v299 = vpop.f32.mrf.mxu0
    %300 = vmatprep.mubr.f32.mxu0 0.0
    %301 = vmatmul.mubr.f32.gmra.mxu0 %v160
    %v302 = vpop.f32.mrf.mxu0
    %v303 = vadd.f32 0.0, %v302
    %v304 = vpop.f32.mrf.mxu0
    %305 = vmatprep.mubr.f32.mxu0 0.0
    %306 = vmatmul.mubr.f32.gmra.mxu0 %v161
    %v307 = vpop.f32.mrf.mxu0
    %v308 = vadd.f32 0.0, %v307
    %v309 = vpop.f32.mrf.mxu0
    %310 = vmatprep.mubr.f32.mxu0 0.0
    %311 = vmatmul.mubr.f32.gmra.mxu0 %v162
    %v312 = vpop.f32.mrf.mxu0
    %v313 = vadd.f32 0.0, %v312
    %v314 = vpop.f32.mrf.mxu0
    %315 = vmatprep.mubr.f32.mxu0 0.0
    %316 = vmatmul.mubr.f32.gmra.mxu0 %v163
    %v317 = vpop.f32.mrf.mxu0
    %v318 = vadd.f32 0.0, %v317
    %v319 = vpop.f32.mrf.mxu0
    %320 = vmatprep.mubr.f32.mxu0 0.0
    %321 = vmatmul.mubr.f32.gmra.mxu0 %v164
    %v322 = vpop.f32.mrf.mxu0
    %v323 = vadd.f32 0.0, %v322
    %v324 = vpop.f32.mrf.mxu0
    %325 = vdwg.mxu0
    %v326 = vld [vmem:[%s123] sm:$0xff]
    %v327 = vld [vmem:[%s123 + $0x8] sm:$0xff]
    %v328 = vld [vmem:[%s123 + $0x10] sm:$0xff]
    %v329 = vld [vmem:[%s123 + $0x18] sm:$0xff]
    %v330 = vld [vmem:[%s123 + $0x20] sm:$0xff]
    %v331 = vld [vmem:[%s123 + $0x28] sm:$0xff]
    %v332 = vld [vmem:[%s123 + $0x30] sm:$0xff]
    %v333 = vld [vmem:[%s123 + $0x38] sm:$0xff]
    %v334 = vld [vmem:[%s123 + $0x40] sm:$0xff]
    %v335 = vld [vmem:[%s123 + $0x48] sm:$0xff]
    %v336 = vld [vmem:[%s123 + $0x50] sm:$0xff]
    %v337 = vld [vmem:[%s123 + $0x58] sm:$0xff]
    %v338 = vld [vmem:[%s123 + $0x60] sm:$0xff]
    %v339 = vld [vmem:[%s123 + $0x68] sm:$0xff]
    %v340 = vld [vmem:[%s123 + $0x70] sm:$0xff]
    %v341 = vld [vmem:[%s123 + $0x78] sm:$0xff]
    %v342 = vmul.f32 %v248, 2.0
    %v343 = vmul.f32 %v253, 2.0
    %v344 = vmul.f32 %v258, 2.0
    %v345 = vmul.f32 %v263, 2.0
    %v346 = vmul.f32 %v268, 2.0
    %v347 = vmul.f32 %v273, 2.0
    %v348 = vmul.f32 %v278, 2.0
    %v349 = vmul.f32 %v283, 2.0
    %v350 = vmul.f32 %v288, 2.0
    %v351 = vmul.f32 %v293, 2.0
    %v352 = vmul.f32 %v298, 2.0
    %v353 = vmul.f32 %v303, 2.0
    %v354 = vmul.f32 %v308, 2.0
    %v355 = vmul.f32 %v313, 2.0
    %v356 = vmul.f32 %v318, 2.0
    %v357 = vmul.f32 %v323, 2.0
    %359 = vset.pattern.permute.xlu0 0
    %360 = vperm.xlu0 %359, %v326
    %v361 = vpop.permute.xlu0 %360
    %364 = vset.pattern.permute.xlu0 0
    %365 = vperm.xlu0 %364, %v327
    %v366 = vpop.permute.xlu0 %365
    %369 = vset.pattern.permute.xlu0 0
    %370 = vperm.xlu0 %369, %v328
    %v371 = vpop.permute.xlu0 %370
    %374 = vset.pattern.permute.xlu0 0
    %375 = vperm.xlu0 %374, %v329
    %v376 = vpop.permute.xlu0 %375
    %379 = vset.pattern.permute.xlu0 0
    %380 = vperm.xlu0 %379, %v330
    %v381 = vpop.permute.xlu0 %380
    %384 = vset.pattern.permute.xlu0 0
    %385 = vperm.xlu0 %384, %v331
    %v386 = vpop.permute.xlu0 %385
    %389 = vset.pattern.permute.xlu0 0
    %390 = vperm.xlu0 %389, %v332
    %v391 = vpop.permute.xlu0 %390
    %394 = vset.pattern.permute.xlu0 0
    %395 = vperm.xlu0 %394, %v333
    %v396 = vpop.permute.xlu0 %395
    %399 = vset.pattern.permute.xlu0 0
    %400 = vperm.xlu0 %399, %v334
    %v401 = vpop.permute.xlu0 %400
    %404 = vset.pattern.permute.xlu0 0
    %405 = vperm.xlu0 %404, %v335
    %v406 = vpop.permute.xlu0 %405
    %409 = vset.pattern.permute.xlu0 0
    %410 = vperm.xlu0 %409, %v336
    %v411 = vpop.permute.xlu0 %410
    %414 = vset.pattern.permute.xlu0 0
    %415 = vperm.xlu0 %414, %v337
    %v416 = vpop.permute.xlu0 %415
    %419 = vset.pattern.permute.xlu0 0
    %420 = vperm.xlu0 %419, %v338
    %v421 = vpop.permute.xlu0 %420
    %424 = vset.pattern.permute.xlu0 0
    %425 = vperm.xlu0 %424, %v339
    %v426 = vpop.permute.xlu0 %425
    %429 = vset.pattern.permute.xlu0 0
    %430 = vperm.xlu0 %429, %v340
    %v431 = vpop.permute.xlu0 %430
    %434 = vset.pattern.permute.xlu0 0
    %435 = vperm.xlu0 %434, %v341
    %v436 = vpop.permute.xlu0 %435
    %v438 = vsub.f32 %v361, %v342
    %v439 = vsub.f32 %v366, %v343
    %v440 = vsub.f32 %v371, %v344
    %v441 = vsub.f32 %v376, %v345
    %v442 = vsub.f32 %v381, %v346
    %v443 = vsub.f32 %v386, %v347
    %v444 = vsub.f32 %v391, %v348
    %v445 = vsub.f32 %v396, %v349
    %v446 = vsub.f32 %v401, %v350
    %v447 = vsub.f32 %v406, %v351
    %v448 = vsub.f32 %v411, %v352
    %v449 = vsub.f32 %v416, %v353
    %v450 = vsub.f32 %v421, %v354
    %v451 = vsub.f32 %v426, %v355
    %v452 = vsub.f32 %v431, %v356
    %v453 = vsub.f32 %v436, %v357
    %v454 = vld [vmem:[%s129] sm:$0x1]
    %v456 = vlaneseq
    %v457 = vshrl.u32 %v456, 7
    %v458 = vsub.s32 0, %v457
    %v459 = vrot.slane %v454, %v458
    %v461 = vadd.f32 %v438, %v459
    %v462 = vadd.f32 %v439, %v459
    %v463 = vadd.f32 %v440, %v459
    %v464 = vadd.f32 %v441, %v459
    %v465 = vadd.f32 %v442, %v459
    %v466 = vadd.f32 %v443, %v459
    %v467 = vadd.f32 %v444, %v459
    %v468 = vadd.f32 %v445, %v459
    %v469 = vadd.f32 %v446, %v459
    %v470 = vadd.f32 %v447, %v459
    %v471 = vadd.f32 %v448, %v459
    %v472 = vadd.f32 %v449, %v459
    %v473 = vadd.f32 %v450, %v459
    %v474 = vadd.f32 %v451, %v459
    %v475 = vadd.f32 %v452, %v459
    %v476 = vadd.f32 %v453, %v459
    %v477 = vmul.f32 %v461, -0.001953125
    %v478 = vmul.f32 %v462, -0.001953125
    %v479 = vmul.f32 %v463, -0.001953125
    %v480 = vmul.f32 %v464, -0.001953125
    %v481 = vmul.f32 %v465, -0.001953125
    %v482 = vmul.f32 %v466, -0.001953125
    %v483 = vmul.f32 %v467, -0.001953125
    %v484 = vmul.f32 %v468, -0.001953125
    %v485 = vmul.f32 %v469, -0.001953125
    %v486 = vmul.f32 %v470, -0.001953125
    %v487 = vmul.f32 %v471, -0.001953125
    %v488 = vmul.f32 %v472, -0.001953125
    %v489 = vmul.f32 %v473, -0.001953125
    %v490 = vmul.f32 %v474, -0.001953125
    %v491 = vmul.f32 %v475, -0.001953125
    %v492 = vmul.f32 %v476, -0.001953125
    %v493 = vmul.f32 %v477, 1.442695
    %v494 = vpow.pop %v493
    %v495 = vmul.f32 %v478, 1.442695
    %v496 = vpow.pop %v495
    %v497 = vmul.f32 %v479, 1.442695
    %v498 = vpow.pop %v497
    %v499 = vmul.f32 %v480, 1.442695
    %v500 = vpow.pop %v499
    %v501 = vmul.f32 %v481, 1.442695
    %v502 = vpow.pop %v501
    %v503 = vmul.f32 %v482, 1.442695
    %v504 = vpow.pop %v503
    %v505 = vmul.f32 %v483, 1.442695
    %v506 = vpow.pop %v505
    %v507 = vmul.f32 %v484, 1.442695
    %v508 = vpow.pop %v507
    %v509 = vmul.f32 %v485, 1.442695
    %v510 = vpow.pop %v509
    %v511 = vmul.f32 %v486, 1.442695
    %v512 = vpow.pop %v511
    %v513 = vmul.f32 %v487, 1.442695
    %v514 = vpow.pop %v513
    %v515 = vmul.f32 %v488, 1.442695
    %v516 = vpow.pop %v515
    %v517 = vmul.f32 %v489, 1.442695
    %v518 = vpow.pop %v517
    %v519 = vmul.f32 %v490, 1.442695
    %v520 = vpow.pop %v519
    %v521 = vmul.f32 %v491, 1.442695
    %v522 = vpow.pop %v521
    %v523 = vmul.f32 %v492, 1.442695
    %v524 = vpow.pop %v523
    %v525 = vmul.f32 %v494, %v494
    %v526 = vmul.f32 %v496, %v496
    %v527 = vmul.f32 %v498, %v498
    %v528 = vmul.f32 %v500, %v500
    %v529 = vmul.f32 %v502, %v502
    %v530 = vmul.f32 %v504, %v504
    %v531 = vmul.f32 %v506, %v506
    %v532 = vmul.f32 %v508, %v508
    %v533 = vmul.f32 %v510, %v510
    %v534 = vmul.f32 %v512, %v512
    %v535 = vmul.f32 %v514, %v514
    %v536 = vmul.f32 %v516, %v516
    %v537 = vmul.f32 %v518, %v518
    %v538 = vmul.f32 %v520, %v520
    %v539 = vmul.f32 %v522, %v522
    %v540 = vmul.f32 %v524, %v524
    %v541 = vmul.f32 %v525, %v525
    %v542 = vmul.f32 %v526, %v526
    %v543 = vmul.f32 %v527, %v527
    %v544 = vmul.f32 %v528, %v528
    %v545 = vmul.f32 %v529, %v529
    %v546 = vmul.f32 %v530, %v530
    %v547 = vmul.f32 %v531, %v531
    %v548 = vmul.f32 %v532, %v532
    %v549 = vmul.f32 %v533, %v533
    %v550 = vmul.f32 %v534, %v534
    %v551 = vmul.f32 %v535, %v535
    %v552 = vmul.f32 %v536, %v536
    %v553 = vmul.f32 %v537, %v537
    %v554 = vmul.f32 %v538, %v538
    %v555 = vmul.f32 %v539, %v539
    %v556 = vmul.f32 %v540, %v540
    %v557 = vadd.f32 %v494, %v541
    %v558 = vadd.f32 %v496, %v542
    %v559 = vadd.f32 %v498, %v543
    %v560 = vadd.f32 %v500, %v544
    %v561 = vadd.f32 %v502, %v545
    %v562 = vadd.f32 %v504, %v546
    %v563 = vadd.f32 %v506, %v547
    %v564 = vadd.f32 %v508, %v548
    %v565 = vadd.f32 %v510, %v549
    %v566 = vadd.f32 %v512, %v550
    %v567 = vadd.f32 %v514, %v551
    %v568 = vadd.f32 %v516, %v552
    %v569 = vadd.f32 %v518, %v553
    %v570 = vadd.f32 %v520, %v554
    %v571 = vadd.f32 %v522, %v555
    %v572 = vadd.f32 %v524, %v556
    %v573 = vmul.f32 %v541, %v541
    %v574 = vmul.f32 %v542, %v542
    %v575 = vmul.f32 %v543, %v543
    %v576 = vmul.f32 %v544, %v544
    %v577 = vmul.f32 %v545, %v545
    %v578 = vmul.f32 %v546, %v546
    %v579 = vmul.f32 %v547, %v547
    %v580 = vmul.f32 %v548, %v548
    %v581 = vmul.f32 %v549, %v549
    %v582 = vmul.f32 %v550, %v550
    %v583 = vmul.f32 %v551, %v551
    %v584 = vmul.f32 %v552, %v552
    %v585 = vmul.f32 %v553, %v553
    %v586 = vmul.f32 %v554, %v554
    %v587 = vmul.f32 %v555, %v555
    %v588 = vmul.f32 %v556, %v556
    %v589 = vmul.f32 %v573, %v573
    %v590 = vmul.f32 %v574, %v574
    %v591 = vmul.f32 %v575, %v575
    %v592 = vmul.f32 %v576, %v576
    %v593 = vmul.f32 %v577, %v577
    %v594 = vmul.f32 %v578, %v578
    %v595 = vmul.f32 %v579, %v579
    %v596 = vmul.f32 %v580, %v580
    %v597 = vmul.f32 %v581, %v581
    %v598 = vmul.f32 %v582, %v582
    %v599 = vmul.f32 %v583, %v583
    %v600 = vmul.f32 %v584, %v584
    %v601 = vmul.f32 %v585, %v585
    %v602 = vmul.f32 %v586, %v586
    %v603 = vmul.f32 %v587, %v587
    %v604 = vmul.f32 %v588, %v588
    %v605 = vadd.f32 %v557, %v589
    %v606 = vadd.f32 %v558, %v590
    %v607 = vadd.f32 %v559, %v591
    %v608 = vadd.f32 %v560, %v592
    %v609 = vadd.f32 %v561, %v593
    %v610 = vadd.f32 %v562, %v594
    %v611 = vadd.f32 %v563, %v595
    %v612 = vadd.f32 %v564, %v596
    %v613 = vadd.f32 %v565, %v597
    %v614 = vadd.f32 %v566, %v598
    %v615 = vadd.f32 %v567, %v599
    %v616 = vadd.f32 %v568, %v600
    %v617 = vadd.f32 %v569, %v601
    %v618 = vadd.f32 %v570, %v602
    %v619 = vadd.f32 %v571, %v603
    %v620 = vadd.f32 %v572, %v604
    %v621 = vmul.f32 %v461, -0.125
    %v622 = vmul.f32 %v462, -0.125
    %v623 = vmul.f32 %v463, -0.125
    %v624 = vmul.f32 %v464, -0.125
    %v625 = vmul.f32 %v465, -0.125
    %v626 = vmul.f32 %v466, -0.125
    %v627 = vmul.f32 %v467, -0.125
    %v628 = vmul.f32 %v468, -0.125
    %v629 = vmul.f32 %v469, -0.125
    %v630 = vmul.f32 %v470, -0.125
    %v631 = vmul.f32 %v471, -0.125
    %v632 = vmul.f32 %v472, -0.125
    %v633 = vmul.f32 %v473, -0.125
    %v634 = vmul.f32 %v474, -0.125
    %v635 = vmul.f32 %v475, -0.125
    %v636 = vmul.f32 %v476, -0.125
    %v637 = vmul.f32 %v621, 1.442695
    %v638 = vpow.pop %v637
    %v639 = vmul.f32 %v622, 1.442695
    %v640 = vpow.pop %v639
    %v641 = vmul.f32 %v623, 1.442695
    %v642 = vpow.pop %v641
    %v643 = vmul.f32 %v624, 1.442695
    %v644 = vpow.pop %v643
    %v645 = vmul.f32 %v625, 1.442695
    %v646 = vpow.pop %v645
    %v647 = vmul.f32 %v626, 1.442695
    %v648 = vpow.pop %v647
    %v649 = vmul.f32 %v627, 1.442695
    %v650 = vpow.pop %v649
    %v651 = vmul.f32 %v628, 1.442695
    %v652 = vpow.pop %v651
    %v653 = vmul.f32 %v629, 1.442695
    %v654 = vpow.pop %v653
    %v655 = vmul.f32 %v630, 1.442695
    %v656 = vpow.pop %v655
    %v657 = vmul.f32 %v631, 1.442695
    %v658 = vpow.pop %v657
    %v659 = vmul.f32 %v632, 1.442695
    %v660 = vpow.pop %v659
    %v661 = vmul.f32 %v633, 1.442695
    %v662 = vpow.pop %v661
    %v663 = vmul.f32 %v634, 1.442695
    %v664 = vpow.pop %v663
    %v665 = vmul.f32 %v635, 1.442695
    %v666 = vpow.pop %v665
    %v667 = vmul.f32 %v636, 1.442695
    %v668 = vpow.pop %v667
    %v669 = vadd.f32 %v605, %v638
    %v670 = vadd.f32 %v606, %v640
    %v671 = vadd.f32 %v607, %v642
    %v672 = vadd.f32 %v608, %v644
    %v673 = vadd.f32 %v609, %v646
    %v674 = vadd.f32 %v610, %v648
    %v675 = vadd.f32 %v611, %v650
    %v676 = vadd.f32 %v612, %v652
    %v677 = vadd.f32 %v613, %v654
    %v678 = vadd.f32 %v614, %v656
    %v679 = vadd.f32 %v615, %v658
    %v680 = vadd.f32 %v616, %v660
    %v681 = vadd.f32 %v617, %v662
    %v682 = vadd.f32 %v618, %v664
    %v683 = vadd.f32 %v619, %v666
    %v684 = vadd.f32 %v620, %v668
    %v685 = vmul.f32 %v638, %v638
    %v686 = vmul.f32 %v640, %v640
    %v687 = vmul.f32 %v642, %v642
    %v688 = vmul.f32 %v644, %v644
    %v689 = vmul.f32 %v646, %v646
    %v690 = vmul.f32 %v648, %v648
    %v691 = vmul.f32 %v650, %v650
    %v692 = vmul.f32 %v652, %v652
    %v693 = vmul.f32 %v654, %v654
    %v694 = vmul.f32 %v656, %v656
    %v695 = vmul.f32 %v658, %v658
    %v696 = vmul.f32 %v660, %v660
    %v697 = vmul.f32 %v662, %v662
    %v698 = vmul.f32 %v664, %v664
    %v699 = vmul.f32 %v666, %v666
    %v700 = vmul.f32 %v668, %v668
    %v701 = vmul.f32 %v685, %v685
    %v702 = vmul.f32 %v686, %v686
    %v703 = vmul.f32 %v687, %v687
    %v704 = vmul.f32 %v688, %v688
    %v705 = vmul.f32 %v689, %v689
    %v706 = vmul.f32 %v690, %v690
    %v707 = vmul.f32 %v691, %v691
    %v708 = vmul.f32 %v692, %v692
    %v709 = vmul.f32 %v693, %v693
    %v710 = vmul.f32 %v694, %v694
    %v711 = vmul.f32 %v695, %v695
    %v712 = vmul.f32 %v696, %v696
    %v713 = vmul.f32 %v697, %v697
    %v714 = vmul.f32 %v698, %v698
    %v715 = vmul.f32 %v699, %v699
    %v716 = vmul.f32 %v700, %v700
    %v717 = vadd.f32 %v669, %v701
    %v718 = vadd.f32 %v670, %v702
    %v719 = vadd.f32 %v671, %v703
    %v720 = vadd.f32 %v672, %v704
    %v721 = vadd.f32 %v673, %v705
    %v722 = vadd.f32 %v674, %v706
    %v723 = vadd.f32 %v675, %v707
    %v724 = vadd.f32 %v676, %v708
    %v725 = vadd.f32 %v677, %v709
    %v726 = vadd.f32 %v678, %v710
    %v727 = vadd.f32 %v679, %v711
    %v728 = vadd.f32 %v680, %v712
    %v729 = vadd.f32 %v681, %v713
    %v730 = vadd.f32 %v682, %v714
    %v731 = vadd.f32 %v683, %v715
    %v732 = vadd.f32 %v684, %v716
    %v733 = vld [vmem:[%s136] sm:$0xff]
    %v734 = vld [vmem:[%s136 + $0x8] sm:$0xff]
    %v735 = vld [vmem:[%s136 + $0x10] sm:$0xff]
    %v736 = vld [vmem:[%s136 + $0x18] sm:$0xff]
    %v737 = vld [vmem:[%s136 + $0x20] sm:$0xff]
    %v738 = vld [vmem:[%s136 + $0x28] sm:$0xff]
    %v739 = vld [vmem:[%s136 + $0x30] sm:$0xff]
    %v740 = vld [vmem:[%s136 + $0x38] sm:$0xff]
    %v741 = vld [vmem:[%s136 + $0x40] sm:$0xff]
    %v742 = vld [vmem:[%s136 + $0x48] sm:$0xff]
    %v743 = vld [vmem:[%s136 + $0x50] sm:$0xff]
    %v744 = vld [vmem:[%s136 + $0x58] sm:$0xff]
    %v745 = vld [vmem:[%s136 + $0x60] sm:$0xff]
    %v746 = vld [vmem:[%s136 + $0x68] sm:$0xff]
    %v747 = vld [vmem:[%s136 + $0x70] sm:$0xff]
    %v748 = vld [vmem:[%s136 + $0x78] sm:$0xff]
    %750 = vset.pattern.permute.xlu0 0
    %751 = vperm.xlu0 %750, %v733
    %v752 = vpop.permute.xlu0 %751
    %755 = vset.pattern.permute.xlu0 0
    %756 = vperm.xlu0 %755, %v734
    %v757 = vpop.permute.xlu0 %756
    %760 = vset.pattern.permute.xlu0 0
    %761 = vperm.xlu0 %760, %v735
    %v762 = vpop.permute.xlu0 %761
    %765 = vset.pattern.permute.xlu0 0
    %766 = vperm.xlu0 %765, %v736
    %v767 = vpop.permute.xlu0 %766
    %770 = vset.pattern.permute.xlu0 0
    %771 = vperm.xlu0 %770, %v737
    %v772 = vpop.permute.xlu0 %771
    %775 = vset.pattern.permute.xlu0 0
    %776 = vperm.xlu0 %775, %v738
    %v777 = vpop.permute.xlu0 %776
    %780 = vset.pattern.permute.xlu0 0
    %781 = vperm.xlu0 %780, %v739
    %v782 = vpop.permute.xlu0 %781
    %785 = vset.pattern.permute.xlu0 0
    %786 = vperm.xlu0 %785, %v740
    %v787 = vpop.permute.xlu0 %786
    %790 = vset.pattern.permute.xlu0 0
    %791 = vperm.xlu0 %790, %v741
    %v792 = vpop.permute.xlu0 %791
    %795 = vset.pattern.permute.xlu0 0
    %796 = vperm.xlu0 %795, %v742
    %v797 = vpop.permute.xlu0 %796
    %800 = vset.pattern.permute.xlu0 0
    %801 = vperm.xlu0 %800, %v743
    %v802 = vpop.permute.xlu0 %801
    %805 = vset.pattern.permute.xlu0 0
    %806 = vperm.xlu0 %805, %v744
    %v807 = vpop.permute.xlu0 %806
    %810 = vset.pattern.permute.xlu0 0
    %811 = vperm.xlu0 %810, %v745
    %v812 = vpop.permute.xlu0 %811
    %815 = vset.pattern.permute.xlu0 0
    %816 = vperm.xlu0 %815, %v746
    %v817 = vpop.permute.xlu0 %816
    %820 = vset.pattern.permute.xlu0 0
    %821 = vperm.xlu0 %820, %v747
    %v822 = vpop.permute.xlu0 %821
    %825 = vset.pattern.permute.xlu0 0
    %826 = vperm.xlu0 %825, %v748
    %v827 = vpop.permute.xlu0 %826
    %v829 = vmul.f32 %v717, %v752
    %v830 = vmul.f32 %v718, %v757
    %v831 = vmul.f32 %v719, %v762
    %v832 = vmul.f32 %v720, %v767
    %v833 = vmul.f32 %v721, %v772
    %v834 = vmul.f32 %v722, %v777
    %v835 = vmul.f32 %v723, %v782
    %v836 = vmul.f32 %v724, %v787
    %v837 = vmul.f32 %v725, %v792
    %v838 = vmul.f32 %v726, %v797
    %v839 = vmul.f32 %v727, %v802
    %v840 = vmul.f32 %v728, %v807
    %v841 = vmul.f32 %v729, %v812
    %v842 = vmul.f32 %v730, %v817
    %v843 = vmul.f32 %v731, %v822
    %v844 = vmul.f32 %v732, %v827
    %v845 = vld [vmem:[%s142] sm:$0x1]
    %v847 = vlaneseq
    %v848 = vshrl.u32 %v847, 7
    %v849 = vsub.s32 0, %v848
    %v850 = vrot.slane %v845, %v849
    %v852 = vmul.f32 %v829, %v850
    %v853 = vmul.f32 %v830, %v850
    %v854 = vmul.f32 %v831, %v850
    %v855 = vmul.f32 %v832, %v850
    %v856 = vmul.f32 %v833, %v850
    %v857 = vmul.f32 %v834, %v850
    %v858 = vmul.f32 %v835, %v850
    %v859 = vmul.f32 %v836, %v850
    %v860 = vmul.f32 %v837, %v850
    %v861 = vmul.f32 %v838, %v850
    %v862 = vmul.f32 %v839, %v850
    %v863 = vmul.f32 %v840, %v850
    %v864 = vmul.f32 %v841, %v850
    %v865 = vmul.f32 %v842, %v850
    %v866 = vmul.f32 %v843, %v850
    %v867 = vmul.f32 %v844, %v850
    %s868 = sld [smem:[#allocation4]]
    %s869 = sld [smem:[#allocation5]]
    %p870 = scmp.eq.s32.totalorder %s868, %s869
    %s871 = scalar_select %p870, 1.0, 2.0
    %v872 = vld [vmem:[#allocation2] sm:$0xff]
    %v873 = vadd.f32 %v852, %v853
    %v874 = vadd.f32 %v873, %v854
    %v875 = vadd.f32 %v874, %v855
    %v876 = vadd.f32 %v875, %v856
    %v877 = vadd.f32 %v876, %v857
    %v878 = vadd.f32 %v877, %v858
    %v879 = vadd.f32 %v878, %v859
    %v880 = vadd.f32 %v879, %v860
    %v881 = vadd.f32 %v880, %v861
    %v882 = vadd.f32 %v881, %v862
    %v883 = vadd.f32 %v882, %v863
    %v884 = vadd.f32 %v883, %v864
    %v885 = vadd.f32 %v884, %v865
    %v886 = vadd.f32 %v885, %v866
    %v887 = vadd.f32 %v886, %v867
    %v888 = vstv %s871
    %v889 = vmul.f32 %v888, %v887
    %v890 = vadd.f32 %v872, %v889
    %891 = vst [vmem:[#allocation2] sm:$0xff] %v890
    // Predicated region
    $region30: #{mmd_loss.1} parent=1 // pred_check
      %p892 = pneg %p144
    $region31: #{mmd_loss.1} parent=1 // pred_check_branch
      %894 = sbr.rel (%p892) target = $region33
    $region32: #{mmd_loss.1} parent=1 // pred_region
      %v895 = vld [vmem:[#allocation2] sm:$0xff]
      %896 = vadd.xlane.f32.xlu0 %v895
      %v897 = vpop.xlane.xlu0 %896
      %v898 = vrot.slane %v897, 4
      %v899 = vadd.f32 %v897, %v898
      %v900 = vrot.slane %v899, 2
      %v901 = vadd.f32 %v899, %v900
      %v902 = vrot.slane %v901, 1
      %v903 = vadd.f32 %v901, %v902
      %s904 = vtos %v903
      %v905 = vstv %s904
      %v906 = vrcp.pop 64.0
      %v907 = vmul.f32 %v905, %v906
      %vm908 = vcmask 0
      %909 = vst.msk [vmem:[#allocation6] sm:$0x1] %vm908, %v907
    $region33: #{mmd_loss.1} parent=1 // pred_fallthru
      _
    // Predicated region
    $region34: #{mmd_loss.1} parent=1 // pred_check
      _
    $region35: #{mmd_loss.1} parent=1 // pred_check_branch
      %911 = sbr.rel (0) target = $region37
    $region36: #{mmd_loss.1} parent=1 // pred_region
      %s913 = ssub.s32 16, 16
      %914 = vsyncadd [#allocation7], %s913
      %s916 = sshll.u32 [#allocation6], 4
      %s917 = int_to_ptr.vmem [resolvable:$true] %s916
      %919 = dma.vmem_to_hbm [thread:$0]  %s917, 16, %s8, [#allocation7]
    $region37: #{mmd_loss.1} parent=1 // pred_fallthru
      _
    // Predicated region
    $region38: #{mmd_loss.1} parent=1 // pred_check
      _
    $region39: #{mmd_loss.1} parent=1 // pred_check_branch
      %921 = sbr.rel (0) target = $region41
    $region40: #{mmd_loss.1} parent=1 // pred_region
      %922 = dma.done [#allocation7], 16
    $region41: #{mmd_loss.1} parent=1 // pred_fallthru
      _
    %923 = vsyncpa [#allocation7], 1

</llo_original>
